<compile_context>
chip_gen: v7x
topology: tpu7x:2x2x1
jax: 0.10.0
libtpu: 0.0.40
codegen_flags: <defaults>
</compile_context>

<pallas_src>
import jax
import jax.numpy as jnp
from jax.experimental import pallas as pl
from jax.experimental.pallas import tpu as pltpu


def _senet_kernel(x_ref, w1_ref, b1_ref, w2_ref, b2_ref, o_ref):
    # x_ref block: (Bb, C, HW); w1 (Cmid, C), b1 (Cmid, 1), w2 (C, Cmid), b2 (C, 1)
    bb = x_ref.shape[0]

    # ---- Pass 1: global avg / max pooling over the lane (spatial) axis. ----
    # C stays on sublanes; each image contributes two (C, 1) columns (avg, max).
    cols = []
    for b in range(bb):
        xb = x_ref[b]                                               # (C, HW)
        cols.append(jnp.mean(xb.astype(jnp.float32), axis=-1, keepdims=True))  # (C, 1)
        cols.append(jnp.max(xb, axis=-1, keepdims=True).astype(jnp.float32))   # (C, 1)
    pooled = jnp.concatenate(cols, axis=-1)                         # (C, 2*Bb)

    w1 = w1_ref[...]                                                # (Cmid, C)
    b1 = b1_ref[...]                                                # (Cmid, 1)
    w2 = w2_ref[...]                                                # (C, Cmid)
    b2 = b2_ref[...]                                                # (C, 1)

    # ---- Fused tiny MLP over all 2*Bb pooled columns (avg & max of every image). ----
    h = jnp.dot(w1, pooled, preferred_element_type=jnp.float32) + b1          # (Cmid, 2*Bb)
    h = jnp.maximum(h, 0.0)                                                    # ReLU
    g = jax.nn.sigmoid(jnp.dot(w2, h, preferred_element_type=jnp.float32) + b2)  # (C, 2*Bb)

    # ---- Pass 2: rescale. Re-read x from VMEM; gate (C, 1) broadcasts over HW lanes. ----
    for b in range(bb):
        gate = g[:, 2 * b:2 * b + 1] + g[:, 2 * b + 1:2 * b + 2]    # (C, 1)
        o_ref[b] = (x_ref[b] * gate).astype(o_ref.dtype)


def _pick_block_b(B, C, HW, itemsize,
                  vmem_budget_bytes=16 << 20, max_unroll=16):
    """Largest batch-block that (a) divides B, (b) fits the VMEM budget
    (in + out, double-buffered), (c) keeps the unrolled per-image loop bounded,
    and (d) leaves >= 2 grid steps when B >= 2 (v7x megacore split)."""
    per_image = C * HW * itemsize * 2 * 2            # in + out, x2 double buffering
    max_fit = max(1, vmem_budget_bytes // per_image)
    cap = B if B < 2 else max(1, B // 2)             # keep at least 2 grid steps
    bb = max(1, min(max_fit, cap, max_unroll))
    while B % bb:
        bb -= 1
    return bb


def senet_v4_pallas(x, w1, b1, w2, b2):
    """x: (B, C, H, W); w1: (Cmid, C); b1: (Cmid,); w2: (C, Cmid); b2: (C,)."""
    B, C, H, W = x.shape
    HW = H * W
    Cmid = w1.shape[0]

    x2 = x.reshape(B, C, HW)
    b1c = b1.reshape(Cmid, 1)                         # column biases: keep C/Cmid on sublanes
    b2c = b2.reshape(C, 1)

    bb = _pick_block_b(B, C, HW, x.dtype.itemsize)
    grid = (B // bb,)

    out = pl.pallas_call(
        _senet_kernel,
        out_shape=jax.ShapeDtypeStruct((B, C, HW), x.dtype),
        grid_spec=pltpu.PrefetchScalarGridSpec(
            num_scalar_prefetch=0,
            grid=grid,
            in_specs=[
                pl.BlockSpec((bb, C, HW), lambda i: (i, 0, 0)),
                # Weights/biases: constant block index -> stay resident, no per-step re-DMA.
                pl.BlockSpec((Cmid, C), lambda i: (0, 0)),
                pl.BlockSpec((Cmid, 1), lambda i: (0, 0)),
                pl.BlockSpec((C, Cmid), lambda i: (0, 0)),
                pl.BlockSpec((C, 1), lambda i: (0, 0)),
            ],
            out_specs=pl.BlockSpec((bb, C, HW), lambda i: (i, 0, 0)),
        ),
        compiler_params=pltpu.CompilerParams(
            dimension_semantics=("parallel",),
            vmem_limit_bytes=32 * 1024 * 1024,
        ),
    )(x2, w1, b1c, w2, b2c)

    return out.reshape(B, C, H, W)


def senet_v4_ref(x, w1, b1, w2, b2):
    """Pure-JAX reference mirroring the PyTorch forward."""
    x_avg = jnp.mean(x, axis=(2, 3))                  # (B, C)  AdaptiveAvgPool2d(1).squeeze()
    x_max = jnp.max(x, axis=(2, 3))                   # (B, C)  AdaptiveMaxPool2d(1).squeeze()

    def fcs(v):
        h = jnp.maximum(v @ w1.T + b1, 0.0)
        return jax.nn.sigmoid(h @ w2.T + b2)

    x_se = fcs(x_avg) + fcs(x_max)                    # (B, C)
    return x * x_se[:, :, None, None]


if __name__ == "__main__":
    # Module config: c_in=32, r=8 -> c_mid=4
    B, C, H, W = 2, 32, 16, 16
    r = 8
    Cmid = C // r

    key = jax.random.PRNGKey(0)
    kx, k1, k2, k3, k4 = jax.random.split(key, 5)

    x = jax.random.normal(kx, (B, C, H, W), dtype=jnp.float32)
    # Deterministic synthetic parameters (shapes per torch.nn.Linear).
    w1 = jax.random.normal(k1, (Cmid, C), dtype=jnp.float32) * 0.2   # Linear(c_in, c_mid).weight
    b1 = jax.random.normal(k2, (Cmid,), dtype=jnp.float32) * 0.1     # Linear(c_in, c_mid).bias
    w2 = jax.random.normal(k3, (C, Cmid), dtype=jnp.float32) * 0.2   # Linear(c_mid, c_in).weight
    b2 = jax.random.normal(k4, (C,), dtype=jnp.float32) * 0.1        # Linear(c_mid, c_in).bias

    out = senet_v4_pallas(x, w1, b1, w2, b2)
    out = jax.block_until_ready(out)

    ref = senet_v4_ref(x, w1, b1, w2, b2)
    assert out.shape == (B, C, H, W)
    assert jnp.allclose(out, ref, atol=1e-5, rtol=1e-5), "mismatch vs reference"

    print("KERNEL_OK")
</pallas_src>

<mosaic_0001>
module attributes {stable_mosaic.version = 11 : i64} {
  func.func @_senet_kernel(%arg0: i32, %arg1: memref<1x32x256xf32, #tpu.memory_space<vmem>>, %arg2: memref<4x32xf32, #tpu.memory_space<vmem>>, %arg3: memref<4x1xf32, #tpu.memory_space<vmem>>, %arg4: memref<32x4xf32, #tpu.memory_space<vmem>>, %arg5: memref<32x1xf32, #tpu.memory_space<vmem>>, %arg6: memref<1x32x256xf32, #tpu.memory_space<vmem>>) attributes {dimension_semantics = [#tpu.dimension_semantics<parallel>], iteration_bounds = array<i64: 2>, scalar_prefetch = 0 : i64, scratch_operands = 0 : i64, tpu.core_type = #tpu.core_type<tc>, window_params = [{transform_indices = @transform_0, window_bounds = array<i64: 1, 32, 256>}, {pipeline_mode = #tpu.pipeline_mode<synchronous>, transform_indices = @transform_1, window_bounds = array<i64: 4, 32>}, {pipeline_mode = #tpu.pipeline_mode<synchronous>, transform_indices = @transform_2, window_bounds = array<i64: 4, 1>}, {pipeline_mode = #tpu.pipeline_mode<synchronous>, transform_indices = @transform_3, window_bounds = array<i64: 32, 4>}, {pipeline_mode = #tpu.pipeline_mode<synchronous>, transform_indices = @transform_4, window_bounds = array<i64: 32, 1>}, {transform_indices = @transform_5, window_bounds = array<i64: 1, 32, 256>}]} {
    %c0 = arith.constant 0 : index
    %c0_0 = arith.constant 0 : index
    %c0_1 = arith.constant 0 : index
    %0 = vector.load %arg1[%c0, %c0_0, %c0_1] : memref<1x32x256xf32, #tpu.memory_space<vmem>>, vector<1x32x256xf32>
    %1 = vector.shape_cast %0 : vector<1x32x256xf32> to vector<32x256xf32>
    %cst = arith.constant dense<0.000000e+00> : vector<32xf32>
    %2 = vector.multi_reduction <add>, %1, %cst [1] : vector<32x256xf32> to vector<32xf32>
    %3 = vector.shape_cast %2 : vector<32xf32> to vector<32x1xf32>
    %cst_2 = arith.constant 2.560000e+02 : f32
    %4 = vector.broadcast %cst_2 : f32 to vector<32x1xf32>
    %5 = arith.divf %3, %4 : vector<32x1xf32>
    %cst_3 = arith.constant dense<0xFF800000> : vector<32xf32>
    %6 = vector.multi_reduction <maximumf>, %1, %cst_3 [1] : vector<32x256xf32> to vector<32xf32>
    %7 = vector.shape_cast %6 : vector<32xf32> to vector<32x1xf32>
    %8 = tpu.concatenate %5, %7 in 1 : vector<32x1xf32>, vector<32x1xf32> -> vector<32x2xf32>
    %c0_4 = arith.constant 0 : index
    %c0_5 = arith.constant 0 : index
    %9 = vector.load %arg2[%c0_4, %c0_5] : memref<4x32xf32, #tpu.memory_space<vmem>>, vector<4x32xf32>
    %c0_6 = arith.constant 0 : index
    %c0_7 = arith.constant 0 : index
    %10 = vector.load %arg3[%c0_6, %c0_7] : memref<4x1xf32, #tpu.memory_space<vmem>>, vector<4x1xf32>
    %c0_8 = arith.constant 0 : index
    %c0_9 = arith.constant 0 : index
    %11 = vector.load %arg4[%c0_8, %c0_9] : memref<32x4xf32, #tpu.memory_space<vmem>>, vector<32x4xf32>
    %c0_10 = arith.constant 0 : index
    %c0_11 = arith.constant 0 : index
    %12 = vector.load %arg5[%c0_10, %c0_11] : memref<32x1xf32, #tpu.memory_space<vmem>>, vector<32x1xf32>
    %cst_12 = arith.constant dense<0.000000e+00> : vector<4x2xf32>
    %13 = tpu.matmul %9, %8, %cst_12 {dimension_numbers = #tpu.dot_dimension_numbers<[1], [0], [0], [1], [0, 0, 1, 1], [], []>} : vector<4x32xf32>, vector<32x2xf32>, vector<4x2xf32> -> vector<4x2xf32>
    %14 = vector.broadcast %10 : vector<4x1xf32> to vector<4x2xf32>
    %15 = arith.addf %13, %14 : vector<4x2xf32>
    %cst_13 = arith.constant 0.000000e+00 : f32
    %16 = vector.broadcast %cst_13 : f32 to vector<4x2xf32>
    %17 = arith.maximumf %15, %16 : vector<4x2xf32>
    %cst_14 = arith.constant dense<0.000000e+00> : vector<32x2xf32>
    %18 = tpu.matmul %11, %17, %cst_14 {dimension_numbers = #tpu.dot_dimension_numbers<[1], [0], [0], [1], [0, 0, 1, 1], [], []>} : vector<32x4xf32>, vector<4x2xf32>, vector<32x2xf32> -> vector<32x2xf32>
    %19 = vector.broadcast %12 : vector<32x1xf32> to vector<32x2xf32>
    %20 = arith.addf %18, %19 : vector<32x2xf32>
    %21 = arith.negf %20 : vector<32x2xf32>
    %22 = math.exp %21 : vector<32x2xf32>
    %cst_15 = arith.constant 1.000000e+00 : f32
    %23 = vector.broadcast %cst_15 : f32 to vector<32x2xf32>
    %24 = arith.addf %23, %22 : vector<32x2xf32>
    %25 = arith.divf %23, %24 : vector<32x2xf32>
    %26 = vector.extract_strided_slice %25 {offsets = [0, 0], sizes = [32, 1], strides = [1, 1]} : vector<32x2xf32> to vector<32x1xf32>
    %27 = vector.extract_strided_slice %25 {offsets = [0, 1], sizes = [32, 1], strides = [1, 1]} : vector<32x2xf32> to vector<32x1xf32>
    %28 = arith.addf %26, %27 : vector<32x1xf32>
    %c0_16 = arith.constant 0 : index
    %c0_17 = arith.constant 0 : index
    %c0_18 = arith.constant 0 : index
    %29 = vector.load %arg1[%c0_16, %c0_17, %c0_18] : memref<1x32x256xf32, #tpu.memory_space<vmem>>, vector<1x32x256xf32>
    %30 = vector.shape_cast %29 : vector<1x32x256xf32> to vector<32x256xf32>
    %31 = vector.broadcast %28 : vector<32x1xf32> to vector<32x256xf32>
    %32 = arith.mulf %30, %31 : vector<32x256xf32>
    %c0_19 = arith.constant 0 : index
    %c0_20 = arith.constant 0 : index
    %c0_21 = arith.constant 0 : index
    %33 = vector.load %arg6[%c0_19, %c0_20, %c0_21] : memref<1x32x256xf32, #tpu.memory_space<vmem>>, vector<1x32x256xf32>
    %34 = vector.shape_cast %33 : vector<1x32x256xf32> to vector<32x256xf32>
    %35 = vector.shape_cast %32 : vector<32x256xf32> to vector<1x32x256xf32>
    tpu.vector_store %arg6[%c0_19, %c0_20, %c0_21], %35 {strides = array<i32>} : memref<1x32x256xf32, #tpu.memory_space<vmem>>, vector<1x32x256xf32>,
    return
  }
  func.func @transform_0(%arg0: i32) -> (i32, i32, i32) {
    %c0_i32 = arith.constant 0 : i32
    %c0_i32_0 = arith.constant 0 : i32
    %c0_i32_1 = arith.constant 0 : i32
    return %arg0, %c0_i32, %c0_i32_0 : i32, i32, i32
  }
  func.func @transform_1(%arg0: i32) -> (i32, i32) {
    %c0_i32 = arith.constant 0 : i32
    %c0_i32_0 = arith.constant 0 : i32
    %c0_i32_1 = arith.constant 0 : i32
    return %c0_i32, %c0_i32_0 : i32, i32
  }
  func.func @transform_2(%arg0: i32) -> (i32, i32) {
    %c0_i32 = arith.constant 0 : i32
    %c0_i32_0 = arith.constant 0 : i32
    %c0_i32_1 = arith.constant 0 : i32
    return %c0_i32, %c0_i32_0 : i32, i32
  }
  func.func @transform_3(%arg0: i32) -> (i32, i32) {
    %c0_i32 = arith.constant 0 : i32
    %c0_i32_0 = arith.constant 0 : i32
    %c0_i32_1 = arith.constant 0 : i32
    return %c0_i32, %c0_i32_0 : i32, i32
  }
  func.func @transform_4(%arg0: i32) -> (i32, i32) {
    %c0_i32 = arith.constant 0 : i32
    %c0_i32_0 = arith.constant 0 : i32
    %c0_i32_1 = arith.constant 0 : i32
    return %c0_i32, %c0_i32_0 : i32, i32
  }
  func.func @transform_5(%arg0: i32) -> (i32, i32, i32) {
    %c0_i32 = arith.constant 0 : i32
    %c0_i32_0 = arith.constant 0 : i32
    %c0_i32_1 = arith.constant 0 : i32
    return %arg0, %c0_i32, %c0_i32_0 : i32, i32, i32
  }
}

</mosaic_0001>

<llo_original>
// kernel: tpu_custom_call.1
$region0: #{tpu_custom_call.1}
  #allocation0 [shape = 'u32[]', space=smem, size = 0x4, offset = 0x4, fixed_abs, tag = 'smem constant byte address 0x4 - core index']
  #allocation1 [shape = 'u32[144,128]{1,0:T(1,128)}', space=vmem, size = 0x12000, scoped, tag = 'internal scratch']
  %s0 = inlined_call_operand.hbm [shape: f32[2,32,256], index: 0, kind: input, shape index: {}]
  %s1 = inlined_call_operand.vmem [shape: f32[4,32], index: 1, kind: input, shape index: {}]
  %s2 = inlined_call_operand.vmem [shape: f32[4,1], index: 2, kind: input, shape index: {}]
  %s3 = inlined_call_operand.vmem [shape: f32[32,4], index: 3, kind: input, shape index: {}]
  %s4 = inlined_call_operand.vmem [shape: f32[32,1], index: 4, kind: input, shape index: {}]
  %s5 = inlined_call_operand.hbm [shape: f32[2,32,256], index: 5, kind: output, shape index: {}]
  %s6 = sld [smem:[#allocation0]]
  $region57: #{tpu_custom_call.1} parent=0
    _
  %s8 = ssub.s32 1, %s6
  %s9 = scalar_select 0, %s8, %s6
  $region1: #{tpu_custom_call.1} parent=0
    #allocation2 [shape = 'u8[65536]{0}', space=vmem, size = 0x10000, scoped, tag = 'input window, operand 0']
    #allocation3 [shape = 's32[2]{0}', space=sflag, size = 0x8, scoped, tag = 'scoped memory for tpu_custom_call.1']
    #allocation4 [shape = 's32[2]{0}', space=sflag, size = 0x8, scoped, tag = 'scoped memory for tpu_custom_call.1']
    #allocation5 [shape = 'u8[65536]{0}', space=vmem, size = 0x10000, scoped, tag = 'output window, operand 0']
    %10 = vsyncpa [#allocation3], 0
    %s11 = scalar_lea.sflag [#allocation3], 1
    %12 = vsyncpa %s11, 0
    %13 = vsyncpa [#allocation4], 0
    %s14 = scalar_lea.sflag [#allocation4], 1
    %15 = vsyncpa %s14, 0
    loop: start=0, step=1, limit=4
    $region2: #{tpu_custom_call.1} parent=1 // loop_pre_header
      _
    $region3: #{tpu_custom_call.1} parent=1 // loop_header
      %s17 = sphi 0, %s21
      %p18 = scmp.ge.s32.totalorder %s17, 4
      %s27 = sphi 0, %s29
      %s30 = sphi 0, %s27
      %s31 = sphi 0, %s30
      %s47 = sphi 0, %s31
      %s51 = sphi 0, %s51
      %s53 = sphi 0, %s51
      %s54 = sphi 0, %s53
      %s68 = sphi 0, %s54
      %s72 = sphi 0, %s72
      %s74 = sphi 0, %s72
      %s75 = sphi 0, %s74
      %s89 = sphi 0, %s75
      %s93 = sphi 0, %s93
      %s95 = sphi 0, %s93
      %s96 = sphi 0, %s95
      %s110 = sphi 0, %s96
      %s114 = sphi 0, %s114
      %s116 = sphi 0, %s114
      %s117 = sphi 0, %s116
      %s131 = sphi 0, %s117
      %s137 = sphi 0, %s139
      %s140 = sphi 0, %s137
      %s141 = sphi 0, %s140
      %s157 = sphi 0, %s141
    $region4: #{tpu_custom_call.1} parent=1 // loop_header_branch
      %20 = sbr.rel (%p18) target = $region8
    $region5: #{tpu_custom_call.1} parent=1 // loop_body
      %s22 = ssub.s32 %s17, 1
      %s23 = ssub.s32 %s17, 2
      %s24 = sadd.s32 %s17, 1
      %s25 = ssub.s32 %s17, %s24
      %p26 = scmp.eq.s32.totalorder %s25, 0
      %s28 = sadd.s32 %s27, 1
      %s29 = scalar_select %p26, %s27, %s28
      %p32 = pneg %p26
      %p33 = scmp.eq.s32.totalorder %s17, 1
      %p34 = por %p32, %p33
      %p35 = scmp.ne.s32.totalorder %s27, %s30
      %p36 = scmp.eq.s32.totalorder %s17, 0
      %p37 = por %p35, %p36
      %p38 = scmp.ne.s32.totalorder %s27, %s30
      %p39 = scmp.eq.s32.totalorder %s22, 1
      %p40 = por %p38, %p39
      %p41 = scmp.ne.s32.totalorder %s30, %s31
      %p42 = scmp.eq.s32.totalorder %s22, 0
      %p43 = por %p41, %p42
      %p44 = scmp.ne.s32.totalorder %s30, %s31
      %p45 = scmp.eq.s32.totalorder %s23, 1
      %p46 = por %p44, %p45
      %p48 = scmp.ne.s32.totalorder %s31, %s47
      %p49 = scmp.eq.s32.totalorder %s23, 0
      %p50 = por %p48, %p49
      %s52 = sadd.s32 %s51, 1
      %p55 = scmp.eq.s32.totalorder %s17, 1
      %p56 = scmp.ne.s32.totalorder %s51, %s53
      %p57 = scmp.eq.s32.totalorder %s17, 0
      %p58 = por %p56, %p57
      %p59 = scmp.ne.s32.totalorder %s51, %s53
      %p60 = scmp.eq.s32.totalorder %s22, 1
      %p61 = por %p59, %p60
      %p62 = scmp.ne.s32.totalorder %s53, %s54
      %p63 = scmp.eq.s32.totalorder %s22, 0
      %p64 = por %p62, %p63
      %p65 = scmp.ne.s32.totalorder %s53, %s54
      %p66 = scmp.eq.s32.totalorder %s23, 1
      %p67 = por %p65, %p66
      %p69 = scmp.ne.s32.totalorder %s54, %s68
      %p70 = scmp.eq.s32.totalorder %s23, 0
      %p71 = por %p69, %p70
      %s73 = sadd.s32 %s72, 1
      %p76 = scmp.eq.s32.totalorder %s17, 1
      %p77 = scmp.ne.s32.totalorder %s72, %s74
      %p78 = scmp.eq.s32.totalorder %s17, 0
      %p79 = por %p77, %p78
      %p80 = scmp.ne.s32.totalorder %s72, %s74
      %p81 = scmp.eq.s32.totalorder %s22, 1
      %p82 = por %p80, %p81
      %p83 = scmp.ne.s32.totalorder %s74, %s75
      %p84 = scmp.eq.s32.totalorder %s22, 0
      %p85 = por %p83, %p84
      %p86 = scmp.ne.s32.totalorder %s74, %s75
      %p87 = scmp.eq.s32.totalorder %s23, 1
      %p88 = por %p86, %p87
      %p90 = scmp.ne.s32.totalorder %s75, %s89
      %p91 = scmp.eq.s32.totalorder %s23, 0
      %p92 = por %p90, %p91
      %s94 = sadd.s32 %s93, 1
      %p97 = scmp.eq.s32.totalorder %s17, 1
      %p98 = scmp.ne.s32.totalorder %s93, %s95
      %p99 = scmp.eq.s32.totalorder %s17, 0
      %p100 = por %p98, %p99
      %p101 = scmp.ne.s32.totalorder %s93, %s95
      %p102 = scmp.eq.s32.totalorder %s22, 1
      %p103 = por %p101, %p102
      %p104 = scmp.ne.s32.totalorder %s95, %s96
      %p105 = scmp.eq.s32.totalorder %s22, 0
      %p106 = por %p104, %p105
      %p107 = scmp.ne.s32.totalorder %s95, %s96
      %p108 = scmp.eq.s32.totalorder %s23, 1
      %p109 = por %p107, %p108
      %p111 = scmp.ne.s32.totalorder %s96, %s110
      %p112 = scmp.eq.s32.totalorder %s23, 0
      %p113 = por %p111, %p112
      %s115 = sadd.s32 %s114, 1
      %p118 = scmp.eq.s32.totalorder %s17, 1
      %p119 = scmp.ne.s32.totalorder %s114, %s116
      %p120 = scmp.eq.s32.totalorder %s17, 0
      %p121 = por %p119, %p120
      %p122 = scmp.ne.s32.totalorder %s114, %s116
      %p123 = scmp.eq.s32.totalorder %s22, 1
      %p124 = por %p122, %p123
      %p125 = scmp.ne.s32.totalorder %s116, %s117
      %p126 = scmp.eq.s32.totalorder %s22, 0
      %p127 = por %p125, %p126
      %p128 = scmp.ne.s32.totalorder %s116, %s117
      %p129 = scmp.eq.s32.totalorder %s23, 1
      %p130 = por %p128, %p129
      %p132 = scmp.ne.s32.totalorder %s117, %s131
      %p133 = scmp.eq.s32.totalorder %s23, 0
      %p134 = por %p132, %p133
      %s135 = ssub.s32 %s17, %s24
      %p136 = scmp.eq.s32.totalorder %s135, 0
      %s138 = sadd.s32 %s137, 1
      %s139 = scalar_select %p136, %s137, %s138
      %p142 = pneg %p136
      %p143 = scmp.eq.s32.totalorder %s17, 1
      %p144 = por %p142, %p143
      %p145 = scmp.ne.s32.totalorder %s137, %s140
      %p146 = scmp.eq.s32.totalorder %s17, 0
      %p147 = por %p145, %p146
      %p148 = scmp.ne.s32.totalorder %s137, %s140
      %p149 = scmp.eq.s32.totalorder %s22, 1
      %p150 = por %p148, %p149
      %p151 = scmp.ne.s32.totalorder %s140, %s141
      %p152 = scmp.eq.s32.totalorder %s22, 0
      %p153 = por %p151, %p152
      %p154 = scmp.ne.s32.totalorder %s140, %s141
      %p155 = scmp.eq.s32.totalorder %s23, 1
      %p156 = por %p154, %p155
      %p158 = scmp.ne.s32.totalorder %s141, %s157
      %p159 = scmp.eq.s32.totalorder %s23, 0
      %p160 = por %p158, %p159
      %p161 = scmp.le.s32.totalorder 1, %s17
      %p162 = scmp.lt.s32.totalorder %s17, 3
      %p163 = pnand %p161, %p162
      %p164 = pneg %p163
      // Predicated region
      $region9: #{tpu_custom_call.1} parent=5 // pred_check
        _
      $region10: #{tpu_custom_call.1} parent=5 // pred_check_branch
        %166 = sbr.rel (%p163) target = $region12
      $region11: #{tpu_custom_call.1} parent=5 // pred_region
        %s167 = ssub.s32 %s17, 1
        // Predicated region
        $region13: #{tpu_custom_call.1} parent=11 // pred_check
          %p168 = pneg %p64
        $region14: #{tpu_custom_call.1} parent=11 // pred_check_branch
          %170 = sbr.rel (%p168) target = $region16
        $region15: #{tpu_custom_call.1} parent=11 // pred_region
          _
        $region16: #{tpu_custom_call.1} parent=11 // pred_fallthru
          _
        // Predicated region
        $region17: #{tpu_custom_call.1} parent=11 // pred_check
          %p171 = pneg %p85
        $region18: #{tpu_custom_call.1} parent=11 // pred_check_branch
          %173 = sbr.rel (%p171) target = $region20
        $region19: #{tpu_custom_call.1} parent=11 // pred_region
          _
        $region20: #{tpu_custom_call.1} parent=11 // pred_fallthru
          _
        // Predicated region
        $region21: #{tpu_custom_call.1} parent=11 // pred_check
          %p174 = pneg %p106
        $region22: #{tpu_custom_call.1} parent=11 // pred_check_branch
          %176 = sbr.rel (%p174) target = $region24
        $region23: #{tpu_custom_call.1} parent=11 // pred_region
          _
        $region24: #{tpu_custom_call.1} parent=11 // pred_fallthru
          _
        // Predicated region
        $region25: #{tpu_custom_call.1} parent=11 // pred_check
          %p177 = pneg %p127
        $region26: #{tpu_custom_call.1} parent=11 // pred_check_branch
          %179 = sbr.rel (%p177) target = $region28
        $region27: #{tpu_custom_call.1} parent=11 // pred_region
          _
        $region28: #{tpu_custom_call.1} parent=11 // pred_fallthru
          _
      $region12: #{tpu_custom_call.1} parent=5 // pred_fallthru
        _
      %p180 = scmp.lt.s32.totalorder %s17, 2
      // Predicated region
      $region29: #{tpu_custom_call.1} parent=5 // pred_check
        %p181 = pneg %p180
      $region30: #{tpu_custom_call.1} parent=5 // pred_check_branch
        %183 = sbr.rel (%p181) target = $region32
      $region31: #{tpu_custom_call.1} parent=5 // pred_region
        // Predicated region
        $region33: #{tpu_custom_call.1} parent=31 // pred_check
          %p184 = pneg %p37
        $region34: #{tpu_custom_call.1} parent=31 // pred_check_branch
          %186 = sbr.rel (%p184) target = $region36
        $region35: #{tpu_custom_call.1} parent=31 // pred_region
          %s187 = sand.u32 %s27, 1
          %s188 = scalar_lea.sflag [#allocation3], %s187
          %s189 = sand.u32 %s27, 1
          %s190 = smul.addr %s189, 64
          %s191 = scalar_lea.vmem [#allocation2], %s190
          %s193 = ssub.s32 1024, 1024
          %194 = vsyncadd %s188, %s193
          %s195 = smul.addr %s17, 8
          %s196 = smul.addr %s195, 128
          %s197 = scalar_lea.hbm %s0, %s196
          %s198 = sshll.u32 %s191, 4
          %s199 = int_to_ptr.vmem [resolvable:$true] %s198
          %204 = dma.hbm_to_vmem [thread:$0]  %s197, 1024, %s199, %s188, 256, 256, 16
        $region36: #{tpu_custom_call.1} parent=31 // pred_fallthru
          _
      $region32: #{tpu_custom_call.1} parent=5 // pred_fallthru
        _
      %p205 = scmp.le.s32.totalorder 1, %s17
      %p206 = scmp.lt.s32.totalorder %s17, 3
      %p207 = pnand %p205, %p206
      %p208 = pneg %p207
      // Predicated region
      $region37: #{tpu_custom_call.1} parent=5 // pred_check
        _
      $region38: #{tpu_custom_call.1} parent=5 // pred_check_branch
        %210 = sbr.rel (%p207) target = $region40
      $region39: #{tpu_custom_call.1} parent=5 // pred_region
        %s211 = ssub.s32 %s17, 1
        %s212 = sand.u32 %s30, 1
        %s213 = scalar_lea.sflag [#allocation3], %s212
        %s214 = sand.u32 %s30, 1
        %s215 = smul.addr %s214, 64
        %s216 = scalar_lea.vmem [#allocation2], %s215
        // Predicated region
        $region41: #{tpu_custom_call.1} parent=39 // pred_check
          %p217 = pneg %p43
        $region42: #{tpu_custom_call.1} parent=39 // pred_check_branch
          %219 = sbr.rel (%p217) target = $region44
        $region43: #{tpu_custom_call.1} parent=39 // pred_region
          %220 = dma.done %s213, 1024
        $region44: #{tpu_custom_call.1} parent=39 // pred_fallthru
          _
        %s221 = sand.u32 %s30, 1
        %s222 = scalar_lea.sflag [#allocation3], %s221
        %s223 = sand.u32 %s30, 1
        %s224 = smul.addr %s223, 64
        %s225 = scalar_lea.vmem [#allocation2], %s224
        %p226 = pneg %p43
        %p227 = pneg %p40
        %p228 = pneg %p64
        %p229 = pneg %p61
        %p230 = pneg %p85
        %p231 = pneg %p82
        %p232 = pneg %p106
        %p233 = pneg %p103
        %p234 = pneg %p127
        %p235 = pneg %p124
        %p236 = pneg %p153
        %p237 = pneg %p150
        %s238 = sand.u32 %s140, 1
        %s239 = scalar_lea.sflag [#allocation4], %s238
        %s240 = sand.u32 %s140, 1
        %s241 = smul.addr %s240, 64
        %s242 = scalar_lea.vmem [#allocation5], %s241
        %v243 = vld [vmem:[%s216] sm:$0xff]
        %v244 = vld [vmem:[%s216 + $0x8] sm:$0xff]
        %v245 = vld [vmem:[%s216 + $0x10] sm:$0xff]
        %v246 = vld [vmem:[%s216 + $0x18] sm:$0xff]
        %v247 = vld [vmem:[%s216 + $0x20] sm:$0xff]
        %v248 = vld [vmem:[%s216 + $0x28] sm:$0xff]
        %v249 = vld [vmem:[%s216 + $0x30] sm:$0xff]
        %v250 = vld [vmem:[%s216 + $0x38] sm:$0xff]
        %v251 = vadd.f32 %v243, %v244
        %252 = vadd.xlane.f32.xlu0 %v251
        %v253 = vpop.xlane.xlu0 %252
        %v254 = vadd.f32 %v245, %v246
        %255 = vadd.xlane.f32.xlu0 %v254
        %v256 = vpop.xlane.xlu0 %255
        %v257 = vadd.f32 %v247, %v248
        %258 = vadd.xlane.f32.xlu0 %v257
        %v259 = vpop.xlane.xlu0 %258
        %v260 = vadd.f32 %v249, %v250
        %261 = vadd.xlane.f32.xlu0 %v260
        %v262 = vpop.xlane.xlu0 %261
        %v263 = vrcp.pop 256.0
        %v264 = vmul.f32 %v253, %v263
        %v265 = vmul.f32 %v256, %v263
        %v266 = vmul.f32 %v259, %v263
        %v267 = vmul.f32 %v262, %v263
        %v268 = vmax.f32 %v243, %v244
        %269 = vmax.xlane.f32.xlu0 %v268
        %v270 = vpop.xlane.xlu0 %269
        %v271 = vmax.f32 %v245, %v246
        %272 = vmax.xlane.f32.xlu0 %v271
        %v273 = vpop.xlane.xlu0 %272
        %v274 = vmax.f32 %v247, %v248
        %275 = vmax.xlane.f32.xlu0 %v274
        %v276 = vpop.xlane.xlu0 %275
        %v277 = vmax.f32 %v249, %v250
        %278 = vmax.xlane.f32.xlu0 %v277
        %v279 = vpop.xlane.xlu0 %278
        %vm280 = vcmask 7168
        %v281 = vsel %vm280, %v264, %v270
        %v282 = vsel %vm280, %v265, %v273
        %v283 = vsel %vm280, %v266, %v276
        %v284 = vsel %vm280, %v267, %v279
        %v285 = vld [vmem:[%s1] sm:$0xf]
        %v286 = vld [vmem:[%s2] sm:$0xf]
        %v287 = vld [vmem:[%s3] sm:$0xff]
        %v288 = vld [vmem:[%s3 + $0x8] sm:$0xff]
        %v289 = vld [vmem:[%s3 + $0x10] sm:$0xff]
        %v290 = vld [vmem:[%s3 + $0x18] sm:$0xff]
        %v291 = vld [vmem:[%s4] sm:$0xff]
        %v292 = vld [vmem:[%s4 + $0x8] sm:$0xff]
        %v293 = vld [vmem:[%s4 + $0x10] sm:$0xff]
        %v294 = vld [vmem:[%s4 + $0x18] sm:$0xff]
        %296 = vset.pattern.permute.xlu0 0
        %297 = vperm.xlu0 %296, %v286
        %v298 = vpop.permute.xlu0 %297
        %vm300 = vcmask 261120
        %v302 = vsel %vm300, %v285, 0
        %304 = vmatprep.subr.mxu0 0.0
        %305 = vmatpush1.msra.mxu0 %v281
        %306 = vmatprep.subr.mxu0 0.0
        %307 = vmatpush1.msra.mxu0 %v282
        %308 = vmatprep.subr.mxu0 0.0
        %309 = vmatpush1.msra.mxu0 %v283
        %310 = vmatprep.subr.mxu0 0.0
        %311 = vmatpush1.msra.mxu0 %v284
        %312 = vmatprep.subr.mxu0 0.0
        %313 = vmatpush1.msra.mxu0 0.0
        %314 = vmatprep.subr.mxu0 0.0
        %315 = vmatpush1.msra.mxu0 0.0
        %316 = vmatprep.subr.mxu0 0.0
        %317 = vmatpush1.msra.mxu0 0.0
        %318 = vmatprep.subr.mxu0 0.0
        %319 = vmatpush1.msra.mxu0 0.0
        %320 = vmatprep.subr.mxu0 0.0
        %321 = vmatpush1.msra.mxu0 0.0
        %322 = vmatprep.subr.mxu0 0.0
        %323 = vmatpush1.msra.mxu0 0.0
        %324 = vmatprep.subr.mxu0 0.0
        %325 = vmatpush1.msra.mxu0 0.0
        %326 = vmatprep.subr.mxu0 0.0
        %327 = vmatpush1.msra.mxu0 0.0
        %328 = vmatprep.subr.mxu0 0.0
        %329 = vmatpush1.msra.mxu0 0.0
        %330 = vmatprep.subr.mxu0 0.0
        %331 = vmatpush1.msra.mxu0 0.0
        %332 = vmatprep.subr.mxu0 0.0
        %333 = vmatpush1.msra.mxu0 0.0
        %334 = vmatprep.subr.mxu0 0.0
        %335 = vmatpush1.msra.mxu0 0.0
        %336 = vmatprep.subr.mxu0 0.0
        %337 = vmatpush1.msra.mxu0 0.0
        %338 = vmatprep.subr.mxu0 0.0
        %339 = vmatpush1.msra.mxu0 0.0
        %340 = vmatprep.subr.mxu0 0.0
        %341 = vmatpush1.msra.mxu0 0.0
        %342 = vmatprep.subr.mxu0 0.0
        %343 = vmatpush1.msra.mxu0 0.0
        %344 = vmatprep.subr.mxu0 0.0
        %345 = vmatpush1.msra.mxu0 0.0
        %346 = vmatprep.subr.mxu0 0.0
        %347 = vmatpush1.msra.mxu0 0.0
        %348 = vmatprep.subr.mxu0 0.0
        %349 = vmatpush1.msra.mxu0 0.0
        %350 = vmatprep.subr.mxu0 0.0
        %351 = vmatpush1.msra.mxu0 0.0
        %352 = vmatprep.subr.mxu0 0.0
        %353 = vmatpush1.msra.mxu0 0.0
        %354 = vmatprep.subr.mxu0 0.0
        %355 = vmatpush1.msra.mxu0 0.0
        %356 = vmatprep.subr.mxu0 0.0
        %357 = vmatpush1.msra.mxu0 0.0
        %358 = vmatprep.subr.mxu0 0.0
        %359 = vmatpush1.msra.mxu0 0.0
        %360 = vmatprep.subr.mxu0 0.0
        %361 = vmatpush1.msra.mxu0 0.0
        %362 = vmatprep.subr.mxu0 0.0
        %363 = vmatpush1.msra.mxu0 0.0
        %364 = vmatprep.subr.mxu0 0.0
        %365 = vmatpush1.msra.mxu0 0.0
        %366 = vmatprep.subr.mxu0 0.0
        %367 = vmatpush1.msra.mxu0 0.0
        %368 = vmatprep.mubr.f32.mxu0 0.0
        %369 = vmatmul.mubr.f32.gmra.mrb[0].mxu0 %v302
        %v370 = vpop.f32.mrb[0].mxu0
        %v371 = vadd.f32 %v298, %v370
        %v372 = vpop.f32.mrb[0].mxu0
        %373 = vdwg.mxu0
        %v374 = vmax.f32 %v371, 0.0
        %376 = vset.pattern.permute.xlu0 0
        %377 = vperm.xlu0 %376, %v291
        %v378 = vpop.permute.xlu0 %377
        %381 = vset.pattern.permute.xlu0 0
        %382 = vperm.xlu0 %381, %v292
        %v383 = vpop.permute.xlu0 %382
        %386 = vset.pattern.permute.xlu0 0
        %387 = vperm.xlu0 %386, %v293
        %v388 = vpop.permute.xlu0 %387
        %391 = vset.pattern.permute.xlu0 0
        %392 = vperm.xlu0 %391, %v294
        %v393 = vpop.permute.xlu0 %392
        %vm395 = vcmask 31744
        %v397 = vsel %vm395, %v287, 0
        %v400 = vsel %vm395, %v288, 0
        %v403 = vsel %vm395, %v289, 0
        %v406 = vsel %vm395, %v290, 0
        %vm408 = vcmask 1043456
        %v410 = vsel %vm408, %v374, 0
        %412 = vmatprep.subr.mxu0 0.0
        %413 = vmatpush1.msra.mxu0 %v410
        %414 = vmatprep.subr.mxu0 0.0
        %415 = vmatpush1.msra.mxu0 0.0
        %416 = vmatprep.subr.mxu0 0.0
        %417 = vmatpush1.msra.mxu0 0.0
        %418 = vmatprep.subr.mxu0 0.0
        %419 = vmatpush1.msra.mxu0 0.0
        %420 = vmatprep.subr.mxu0 0.0
        %421 = vmatpush1.msra.mxu0 0.0
        %422 = vmatprep.subr.mxu0 0.0
        %423 = vmatpush1.msra.mxu0 0.0
        %424 = vmatprep.subr.mxu0 0.0
        %425 = vmatpush1.msra.mxu0 0.0
        %426 = vmatprep.subr.mxu0 0.0
        %427 = vmatpush1.msra.mxu0 0.0
        %428 = vmatprep.subr.mxu0 0.0
        %429 = vmatpush1.msra.mxu0 0.0
        %430 = vmatprep.subr.mxu0 0.0
        %431 = vmatpush1.msra.mxu0 0.0
        %432 = vmatprep.subr.mxu0 0.0
        %433 = vmatpush1.msra.mxu0 0.0
        %434 = vmatprep.subr.mxu0 0.0
        %435 = vmatpush1.msra.mxu0 0.0
        %436 = vmatprep.subr.mxu0 0.0
        %437 = vmatpush1.msra.mxu0 0.0
        %438 = vmatprep.subr.mxu0 0.0
        %439 = vmatpush1.msra.mxu0 0.0
        %440 = vmatprep.subr.mxu0 0.0
        %441 = vmatpush1.msra.mxu0 0.0
        %442 = vmatprep.subr.mxu0 0.0
        %443 = vmatpush1.msra.mxu0 0.0
        %444 = vmatprep.subr.mxu0 0.0
        %445 = vmatpush1.msra.mxu0 0.0
        %446 = vmatprep.subr.mxu0 0.0
        %447 = vmatpush1.msra.mxu0 0.0
        %448 = vmatprep.subr.mxu0 0.0
        %449 = vmatpush1.msra.mxu0 0.0
        %450 = vmatprep.subr.mxu0 0.0
        %451 = vmatpush1.msra.mxu0 0.0
        %452 = vmatprep.subr.mxu0 0.0
        %453 = vmatpush1.msra.mxu0 0.0
        %454 = vmatprep.subr.mxu0 0.0
        %455 = vmatpush1.msra.mxu0 0.0
        %456 = vmatprep.subr.mxu0 0.0
        %457 = vmatpush1.msra.mxu0 0.0
        %458 = vmatprep.subr.mxu0 0.0
        %459 = vmatpush1.msra.mxu0 0.0
        %460 = vmatprep.subr.mxu0 0.0
        %461 = vmatpush1.msra.mxu0 0.0
        %462 = vmatprep.subr.mxu0 0.0
        %463 = vmatpush1.msra.mxu0 0.0
        %464 = vmatprep.subr.mxu0 0.0
        %465 = vmatpush1.msra.mxu0 0.0
        %466 = vmatprep.subr.mxu0 0.0
        %467 = vmatpush1.msra.mxu0 0.0
        %468 = vmatprep.subr.mxu0 0.0
        %469 = vmatpush1.msra.mxu0 0.0
        %470 = vmatprep.subr.mxu0 0.0
        %471 = vmatpush1.msra.mxu0 0.0
        %472 = vmatprep.subr.mxu0 0.0
        %473 = vmatpush1.msra.mxu0 0.0
        %474 = vmatprep.subr.mxu0 0.0
        %475 = vmatpush1.msra.mxu0 0.0
        %476 = vmatprep.mubr.f32.mxu0 0.0
        %477 = vmatmul.mubr.f32.gmra.mrb[0].mxu0 %v397
        %v478 = vpop.f32.mrb[0].mxu0
        %v479 = vadd.f32 %v378, %v478
        %v480 = vpop.f32.mrb[0].mxu0
        %481 = vmatprep.mubr.f32.mxu0 0.0
        %482 = vmatmul.mubr.f32.gmra.mrb[0].mxu0 %v400
        %v483 = vpop.f32.mrb[0].mxu0
        %v484 = vadd.f32 %v383, %v483
        %v485 = vpop.f32.mrb[0].mxu0
        %486 = vmatprep.mubr.f32.mxu0 0.0
        %487 = vmatmul.mubr.f32.gmra.mrb[0].mxu0 %v403
        %v488 = vpop.f32.mrb[0].mxu0
        %v489 = vadd.f32 %v388, %v488
        %v490 = vpop.f32.mrb[0].mxu0
        %491 = vmatprep.mubr.f32.mxu0 0.0
        %492 = vmatmul.mubr.f32.gmra.mrb[0].mxu0 %v406
        %v493 = vpop.f32.mrb[0].mxu0
        %v494 = vadd.f32 %v393, %v493
        %v495 = vpop.f32.mrb[0].mxu0
        %496 = vdwg.mxu0
        %v497 = vxor.u32 %v479, 2147483648
        %v498 = vxor.u32 %v484, 2147483648
        %v499 = vxor.u32 %v489, 2147483648
        %v500 = vxor.u32 %v494, 2147483648
        %v501 = vmul.f32 %v497, 1.442695
        %v502 = vpow.pop %v501
        %v503 = vmul.f32 %v498, 1.442695
        %v504 = vpow.pop %v503
        %v505 = vmul.f32 %v499, 1.442695
        %v506 = vpow.pop %v505
        %v507 = vmul.f32 %v500, 1.442695
        %v508 = vpow.pop %v507
        %v509 = vadd.f32 %v502, 1.0
        %v510 = vadd.f32 %v504, 1.0
        %v511 = vadd.f32 %v506, 1.0
        %v512 = vadd.f32 %v508, 1.0
        %v513 = vrcp.pop %v509
        %v514 = vmul.f32 1.0, %v513
        %v515 = vrcp.pop %v510
        %v516 = vmul.f32 1.0, %v515
        %v517 = vrcp.pop %v511
        %v518 = vmul.f32 1.0, %v517
        %v519 = vrcp.pop %v512
        %v520 = vmul.f32 1.0, %v519
        %525 = vrot.lane.b32.xlu0 %v514, 127
        %v526 = vpop.permute.xlu0 %525
        %527 = vrot.lane.b32.xlu0 %v516, 127
        %v528 = vpop.permute.xlu0 %527
        %529 = vrot.lane.b32.xlu0 %v518, 127
        %v530 = vpop.permute.xlu0 %529
        %531 = vrot.lane.b32.xlu0 %v520, 127
        %v532 = vpop.permute.xlu0 %531
        %v537 = vadd.f32 %v514, %v526
        %v538 = vadd.f32 %v516, %v528
        %v539 = vadd.f32 %v518, %v530
        %v540 = vadd.f32 %v520, %v532
        %542 = vset.pattern.permute.xlu0 0
        %543 = vperm.xlu0 %542, %v537
        %v544 = vpop.permute.xlu0 %543
        %547 = vset.pattern.permute.xlu0 0
        %548 = vperm.xlu0 %547, %v538
        %v549 = vpop.permute.xlu0 %548
        %552 = vset.pattern.permute.xlu0 0
        %553 = vperm.xlu0 %552, %v539
        %v554 = vpop.permute.xlu0 %553
        %557 = vset.pattern.permute.xlu0 0
        %558 = vperm.xlu0 %557, %v540
        %v559 = vpop.permute.xlu0 %558
        %v561 = vmul.f32 %v243, %v544
        %v562 = vmul.f32 %v244, %v544
        %v563 = vmul.f32 %v245, %v549
        %v564 = vmul.f32 %v246, %v549
        %v565 = vmul.f32 %v247, %v554
        %v566 = vmul.f32 %v248, %v554
        %v567 = vmul.f32 %v249, %v559
        %v568 = vmul.f32 %v250, %v559
        %569 = vst [vmem:[%s242] sm:$0xff] %v561
        %570 = vst [vmem:[%s242 + $0x8] sm:$0xff] %v562
        %571 = vst [vmem:[%s242 + $0x10] sm:$0xff] %v563
        %572 = vst [vmem:[%s242 + $0x18] sm:$0xff] %v564
        %573 = vst [vmem:[%s242 + $0x20] sm:$0xff] %v565
        %574 = vst [vmem:[%s242 + $0x28] sm:$0xff] %v566
        %575 = vst [vmem:[%s242 + $0x30] sm:$0xff] %v567
        %576 = vst [vmem:[%s242 + $0x38] sm:$0xff] %v568
        %s577 = sand.u32 %s140, 1
        %s578 = scalar_lea.sflag [#allocation4], %s577
        %s579 = sand.u32 %s140, 1
        %s580 = smul.addr %s579, 64
        %s581 = scalar_lea.vmem [#allocation5], %s580
        // Predicated region
        $region45: #{tpu_custom_call.1} parent=39 // pred_check
          %p582 = pneg %p150
        $region46: #{tpu_custom_call.1} parent=39 // pred_check_branch
          %584 = sbr.rel (%p582) target = $region48
        $region47: #{tpu_custom_call.1} parent=39 // pred_region
          %s586 = ssub.s32 1024, 1024
          %587 = vsyncadd %s578, %s586
          %s588 = smul.addr %s22, 8
          %s589 = smul.addr %s588, 128
          %s590 = scalar_lea.hbm %s5, %s589
          %s591 = sshll.u32 %s581, 4
          %s592 = int_to_ptr.vmem [resolvable:$true] %s591
          %597 = dma.vmem_to_hbm [thread:$0]  %s592, 1024, %s590, %s578, 256, 256, 16
        $region48: #{tpu_custom_call.1} parent=39 // pred_fallthru
          _
      $region40: #{tpu_custom_call.1} parent=5 // pred_fallthru
        _
      %p598 = scmp.le.s32.totalorder 2, %s17
      // Predicated region
      $region49: #{tpu_custom_call.1} parent=5 // pred_check
        %p599 = pneg %p598
      $region50: #{tpu_custom_call.1} parent=5 // pred_check_branch
        %601 = sbr.rel (%p599) target = $region52
      $region51: #{tpu_custom_call.1} parent=5 // pred_region
        %s602 = ssub.s32 %s17, 2
        // Predicated region
        $region53: #{tpu_custom_call.1} parent=51 // pred_check
          %p603 = pneg %p156
        $region54: #{tpu_custom_call.1} parent=51 // pred_check_branch
          %605 = sbr.rel (%p603) target = $region56
        $region55: #{tpu_custom_call.1} parent=51 // pred_region
          %s606 = sand.u32 %s141, 1
          %s607 = scalar_lea.sflag [#allocation4], %s606
          %s608 = sand.u32 %s141, 1
          %s609 = smul.addr %s608, 64
          %s610 = scalar_lea.vmem [#allocation5], %s609
          %611 = dma.done %s607, 1024
        $region56: #{tpu_custom_call.1} parent=51 // pred_fallthru
          _
      $region52: #{tpu_custom_call.1} parent=5 // pred_fallthru
        _
    $region6: #{tpu_custom_call.1} parent=1 // loop_footer
      %s21 = sadd.s32 1, %s17
    $region7: #{tpu_custom_call.1} parent=1 // loop_footer_branch
      %16 = sbr.rel target = $region3
    $region8: #{tpu_custom_call.1} parent=1 // loop_exit
      _
    %612 = vsyncpa [#allocation3], 1
    %s613 = scalar_lea.sflag [#allocation3], 1
    %614 = vsyncpa %s613, 1
    %615 = vsyncpa [#allocation4], 1
    %s616 = scalar_lea.sflag [#allocation4], 1
    %617 = vsyncpa %s616, 1

</llo_original>
